<compile_context>
chip_gen: v7x
topology: tpu7x:2x2x1
jax: 0.10.0
libtpu: 0.0.40
codegen_flags: <defaults>
</compile_context>

<pallas_src>
import numpy as np
import jax
import jax.numpy as jnp
from jax.experimental import pallas as pl
from jax.experimental.pallas import tpu as pltpu


def _round_up(n: int, m: int) -> int:
    return ((n + m - 1) // m) * m


def _pairwise_mul_kernel(a_ref, b_ref, o_ref):
    """Lane-dense elementwise multiply of one (tb, P*D) batch tile.

    Multiply in f32 for parity with the PyTorch f32 reference even when the
    operands arrive as bf16; cast is free in this memory-bound regime.
    """
    a = a_ref[...].astype(jnp.float32)
    b = b_ref[...].astype(jnp.float32)
    o_ref[...] = (a * b).astype(o_ref.dtype)


def ffm_pairwise_mul(a_flat, b_flat, *, row_tile: int = 1024):
    """a_flat, b_flat: (B, P*D) pair-major operands. Returns (B, P*D) = a * b."""
    B, W = a_flat.shape
    assert b_flat.shape == (B, W)

    # Large, 8-aligned row tile; pad the batch instead of asserting divisibility.
    tb = _round_up(min(row_tile, _round_up(B, 8)), 8)
    Bp = _round_up(B, tb)
    if Bp != B:
        a_flat = jnp.pad(a_flat, ((0, Bp - B), (0, 0)))
        b_flat = jnp.pad(b_flat, ((0, Bp - B), (0, 0)))

    # VMEM budget from the actual tile footprint: 2 inputs + 1 output, each
    # double-buffered, plus ~50% headroom (capped well under physical VMEM).
    in_dsz = jnp.dtype(a_flat.dtype).itemsize
    tile_elems = tb * W
    vmem_needed = 2 * (2 * tile_elems * in_dsz + tile_elems * in_dsz)
    vmem_limit = int(vmem_needed * 1.5) + (1 << 20)
    vmem_limit = max(4 * 1024 * 1024, min(vmem_limit, 100 * 1024 * 1024))

    out = pl.pallas_call(
        _pairwise_mul_kernel,
        out_shape=jax.ShapeDtypeStruct((Bp, W), a_flat.dtype),
        grid_spec=pltpu.PrefetchScalarGridSpec(
            num_scalar_prefetch=0,
            grid=(Bp // tb,),
            in_specs=[
                pl.BlockSpec((tb, W), lambda i: (i, 0)),
                pl.BlockSpec((tb, W), lambda i: (i, 0)),
            ],
            out_specs=pl.BlockSpec((tb, W), lambda i: (i, 0)),
        ),
        compiler_params=pltpu.CompilerParams(
            dimension_semantics=("parallel",),
            vmem_limit_bytes=vmem_limit,
        ),
    )(a_flat, b_flat)

    return out[:B]


def field_aware_fm_forward(x_idx, emb_weights, field_dims, *, row_tile: int = 1024):
    """Full FFM forward.

    x_idx:       (B, F) int32 categorical indices (per-field, un-offset)
    emb_weights: (F, V, D) stacked embedding tables, V = sum(field_dims)
    returns      (B, P, D) pairwise field-aware interactions, pairs in
                 (0,1),(0,2),...,(F-2,F-1) order (matches the PyTorch module).
    """
    F = len(field_dims)
    _, V, D = emb_weights.shape
    P = F * (F - 1) // 2

    offsets = jnp.asarray(
        np.concatenate(([0], np.cumsum(field_dims)[:-1])), dtype=x_idx.dtype
    )
    idx = x_idx + offsets[None, :]                       # (B, F)
    B = idx.shape[0]

    # Static pair index lists (i<j, row-major as in the PyTorch double loop).
    pi, pj = [], []
    for i in range(F - 1):
        for j in range(i + 1, F):
            pi.append(i)
            pj.append(j)
    pairs_i = jnp.asarray(pi, dtype=idx.dtype)           # (P,)
    pairs_j = jnp.asarray(pj, dtype=idx.dtype)           # (P,)

    # Flatten tables so table+row becomes one gather index; XLA fuses the static
    # pair permutation into the gather (no explicit transpose pass over HBM).
    emb_flat = emb_weights.reshape(F * V, D)             # (F*V, D)

    # A[b,p,:] = emb[j_p][idx[b, i_p]];  B[b,p,:] = emb[i_p][idx[b, j_p]]
    a_idx = pairs_j[None, :] * V + idx[:, pi]            # (B, P)
    b_idx = pairs_i[None, :] * V + idx[:, pj]            # (B, P)
    a = jnp.take(emb_flat, a_idx, axis=0)                # (B, P, D)
    b = jnp.take(emb_flat, b_idx, axis=0)                # (B, P, D)

    out_flat = ffm_pairwise_mul(
        a.reshape(B, P * D), b.reshape(B, P * D), row_tile=row_tile
    )
    return out_flat.reshape(B, P, D)


def reference_ffm(x_idx, emb_weights, field_dims):
    """Pure-JAX reference matching the PyTorch module exactly."""
    F = len(field_dims)
    offsets = jnp.asarray(
        np.concatenate(([0], np.cumsum(field_dims)[:-1])), dtype=x_idx.dtype
    )
    idx = x_idx + offsets[None, :]
    xs = [jnp.take(emb_weights[t], idx, axis=0) for t in range(F)]   # (B, F, D) each
    ix = []
    for i in range(F - 1):
        for j in range(i + 1, F):
            ix.append(xs[j][:, i] * xs[i][:, j])
    return jnp.stack(ix, axis=1)


if __name__ == "__main__":
    # Small shapes consistent with the module: 8 fields, embed_dim 32, batch 4.
    field_dims = np.array([3, 4, 5, 6, 7, 2, 9, 4], dtype=np.int32)
    embed_dim = 32
    batch_size = 4

    F = len(field_dims)
    V = int(field_dims.sum())
    P = F * (F - 1) // 2

    key = jax.random.PRNGKey(0)
    k_w, k_x = jax.random.split(key)

    # One embedding table per field (xavier-ish deterministic init).
    emb_weights = 0.1 * jax.random.normal(k_w, (F, V, embed_dim), dtype=jnp.float32)

    # Per-field categorical indices in [0, field_dims[f]).
    x_idx = jax.random.randint(
        k_x, (batch_size, F), 0,
        jnp.asarray(field_dims, dtype=jnp.int32)[None, :], dtype=jnp.int32
    )

    out = field_aware_fm_forward(x_idx, emb_weights, field_dims)
    out = jax.block_until_ready(out)

    ref = reference_ffm(x_idx, emb_weights, field_dims)
    assert out.shape == (batch_size, P, embed_dim)
    assert jnp.allclose(out, ref, atol=1e-6, rtol=1e-6), "mismatch vs reference"

    print("KERNEL_OK")
</pallas_src>

<mosaic_0001>
module attributes {stable_mosaic.version = 11 : i64} {
  func.func @_pairwise_mul_kernel(%arg0: i32, %arg1: memref<8x896xf32, #tpu.memory_space<vmem>>, %arg2: memref<8x896xf32, #tpu.memory_space<vmem>>, %arg3: memref<8x896xf32, #tpu.memory_space<vmem>>) attributes {dimension_semantics = [#tpu.dimension_semantics<parallel>], iteration_bounds = array<i64: 1>, scalar_prefetch = 0 : i64, scratch_operands = 0 : i64, tpu.core_type = #tpu.core_type<tc>, window_params = [{transform_indices = @transform_0, window_bounds = array<i64: 8, 896>}, {transform_indices = @transform_1, window_bounds = array<i64: 8, 896>}, {transform_indices = @transform_2, window_bounds = array<i64: 8, 896>}]} {
    %c0 = arith.constant 0 : index
    %c0_0 = arith.constant 0 : index
    %0 = vector.load %arg1[%c0, %c0_0] : memref<8x896xf32, #tpu.memory_space<vmem>>, vector<8x896xf32>
    %c0_1 = arith.constant 0 : index
    %c0_2 = arith.constant 0 : index
    %1 = vector.load %arg2[%c0_1, %c0_2] : memref<8x896xf32, #tpu.memory_space<vmem>>, vector<8x896xf32>
    %2 = arith.mulf %0, %1 : vector<8x896xf32>
    %c0_3 = arith.constant 0 : index
    %c0_4 = arith.constant 0 : index
    %3 = vector.load %arg3[%c0_3, %c0_4] : memref<8x896xf32, #tpu.memory_space<vmem>>, vector<8x896xf32>
    tpu.vector_store %arg3[%c0_3, %c0_4], %2 {strides = array<i32>} : memref<8x896xf32, #tpu.memory_space<vmem>>, vector<8x896xf32>,
    return
  }
  func.func @transform_0(%arg0: i32) -> (i32, i32) {
    %c0_i32 = arith.constant 0 : i32
    %c0_i32_0 = arith.constant 0 : i32
    return %arg0, %c0_i32 : i32, i32
  }
  func.func @transform_1(%arg0: i32) -> (i32, i32) {
    %c0_i32 = arith.constant 0 : i32
    %c0_i32_0 = arith.constant 0 : i32
    return %arg0, %c0_i32 : i32, i32
  }
  func.func @transform_2(%arg0: i32) -> (i32, i32) {
    %c0_i32 = arith.constant 0 : i32
    %c0_i32_0 = arith.constant 0 : i32
    return %arg0, %c0_i32 : i32, i32
  }
}

</mosaic_0001>

<llo_original>
// kernel: tpu_custom_call.1
$region0: #{tpu_custom_call.1}
  #allocation0 [shape = 'u32[]', space=smem, size = 0x4, offset = 0x4, fixed_abs, tag = 'smem constant byte address 0x4 - core index']
  #allocation1 [shape = 'u32[144,128]{1,0:T(1,128)}', space=vmem, size = 0x12000, scoped, tag = 'internal scratch']
  %s0 = inlined_call_operand.hbm [shape: f32[8,896], index: 0, kind: input, shape index: {}]
  %s1 = inlined_call_operand.hbm [shape: f32[8,896], index: 1, kind: input, shape index: {}]
  %s2 = inlined_call_operand.hbm [shape: f32[8,896], index: 2, kind: output, shape index: {}]
  %s3 = sld [smem:[#allocation0]]
  $region26: #{tpu_custom_call.1} parent=0
    _
  %s5 = ssub.s32 1, %s3
  %s6 = scalar_select 0, %s5, %s3
  $region1: #{tpu_custom_call.1} parent=0
    #allocation2 [shape = 'u8[28672]{0}', space=vmem, size = 0x7000, scoped, tag = 'input window, operand 0, single buffered']
    #allocation3 [shape = 's32[1]{0}', space=sflag, size = 0x4, scoped, tag = 'scoped memory for tpu_custom_call.1']
    #allocation4 [shape = 's32[1]{0}', space=sflag, size = 0x4, scoped, tag = 'scoped memory for tpu_custom_call.1']
    #allocation5 [shape = 'u8[28672]{0}', space=vmem, size = 0x7000, scoped, tag = 'input window, operand 1, single buffered']
    #allocation6 [shape = 's32[1]{0}', space=sflag, size = 0x4, scoped, tag = 'scoped memory for tpu_custom_call.1']
    #allocation7 [shape = 'u8[28672]{0}', space=vmem, size = 0x7000, scoped, tag = 'output window, operand 0, single buffered']
    %7 = vsyncpa [#allocation3], 0
    %8 = vsyncpa [#allocation6], 0
    %9 = vsyncpa [#allocation4], 0
    // Predicated region
    $region2: #{tpu_custom_call.1} parent=1 // pred_check
      _
    $region3: #{tpu_custom_call.1} parent=1 // pred_check_branch
      %11 = sbr.rel (0) target = $region5
    $region4: #{tpu_custom_call.1} parent=1 // pred_region
      %s13 = ssub.s32 896, 896
      %14 = vsyncadd [#allocation3], %s13
      %s16 = sshll.u32 [#allocation2], 4
      %s17 = int_to_ptr.vmem [resolvable:$true] %s16
      %19 = dma.hbm_to_vmem [thread:$0]  %s0, 896, %s17, [#allocation3]
    $region5: #{tpu_custom_call.1} parent=1 // pred_fallthru
      _
    // Predicated region
    $region6: #{tpu_custom_call.1} parent=1 // pred_check
      _
    $region7: #{tpu_custom_call.1} parent=1 // pred_check_branch
      %21 = sbr.rel (0) target = $region9
    $region8: #{tpu_custom_call.1} parent=1 // pred_region
      %s23 = ssub.s32 896, 896
      %24 = vsyncadd [#allocation6], %s23
      %s26 = sshll.u32 [#allocation5], 4
      %s27 = int_to_ptr.vmem [resolvable:$true] %s26
      %29 = dma.hbm_to_vmem [thread:$0]  %s1, 896, %s27, [#allocation6]
    $region9: #{tpu_custom_call.1} parent=1 // pred_fallthru
      _
    // Predicated region
    $region10: #{tpu_custom_call.1} parent=1 // pred_check
      _
    $region11: #{tpu_custom_call.1} parent=1 // pred_check_branch
      %31 = sbr.rel (0) target = $region13
    $region12: #{tpu_custom_call.1} parent=1 // pred_region
      %32 = dma.done [#allocation3], 896
    $region13: #{tpu_custom_call.1} parent=1 // pred_fallthru
      _
    // Predicated region
    $region14: #{tpu_custom_call.1} parent=1 // pred_check
      _
    $region15: #{tpu_custom_call.1} parent=1 // pred_check_branch
      %34 = sbr.rel (0) target = $region17
    $region16: #{tpu_custom_call.1} parent=1 // pred_region
      %35 = dma.done [#allocation6], 896
    $region17: #{tpu_custom_call.1} parent=1 // pred_fallthru
      _
    %v36 = vld [vmem:[#allocation2] sm:$0xff]
    %v37 = vld [vmem:[#allocation2 + $0x8] sm:$0xff]
    %v38 = vld [vmem:[#allocation2 + $0x10] sm:$0xff]
    %v39 = vld [vmem:[#allocation2 + $0x18] sm:$0xff]
    %v40 = vld [vmem:[#allocation2 + $0x20] sm:$0xff]
    %v41 = vld [vmem:[#allocation2 + $0x28] sm:$0xff]
    %v42 = vld [vmem:[#allocation2 + $0x30] sm:$0xff]
    %v43 = vld [vmem:[#allocation5] sm:$0xff]
    %v44 = vld [vmem:[#allocation5 + $0x8] sm:$0xff]
    %v45 = vld [vmem:[#allocation5 + $0x10] sm:$0xff]
    %v46 = vld [vmem:[#allocation5 + $0x18] sm:$0xff]
    %v47 = vld [vmem:[#allocation5 + $0x20] sm:$0xff]
    %v48 = vld [vmem:[#allocation5 + $0x28] sm:$0xff]
    %v49 = vld [vmem:[#allocation5 + $0x30] sm:$0xff]
    %v50 = vmul.f32 %v36, %v43
    %v51 = vmul.f32 %v37, %v44
    %v52 = vmul.f32 %v38, %v45
    %v53 = vmul.f32 %v39, %v46
    %v54 = vmul.f32 %v40, %v47
    %v55 = vmul.f32 %v41, %v48
    %v56 = vmul.f32 %v42, %v49
    %57 = vst [vmem:[#allocation7] sm:$0xff] %v50
    %58 = vst [vmem:[#allocation7 + $0x8] sm:$0xff] %v51
    %59 = vst [vmem:[#allocation7 + $0x10] sm:$0xff] %v52
    %60 = vst [vmem:[#allocation7 + $0x18] sm:$0xff] %v53
    %61 = vst [vmem:[#allocation7 + $0x20] sm:$0xff] %v54
    %62 = vst [vmem:[#allocation7 + $0x28] sm:$0xff] %v55
    %63 = vst [vmem:[#allocation7 + $0x30] sm:$0xff] %v56
    // Predicated region
    $region18: #{tpu_custom_call.1} parent=1 // pred_check
      _
    $region19: #{tpu_custom_call.1} parent=1 // pred_check_branch
      %65 = sbr.rel (0) target = $region21
    $region20: #{tpu_custom_call.1} parent=1 // pred_region
      %s67 = ssub.s32 896, 896
      %68 = vsyncadd [#allocation4], %s67
      %s70 = sshll.u32 [#allocation7], 4
      %s71 = int_to_ptr.vmem [resolvable:$true] %s70
      %73 = dma.vmem_to_hbm [thread:$0]  %s71, 896, %s2, [#allocation4]
    $region21: #{tpu_custom_call.1} parent=1 // pred_fallthru
      _
    // Predicated region
    $region22: #{tpu_custom_call.1} parent=1 // pred_check
      _
    $region23: #{tpu_custom_call.1} parent=1 // pred_check_branch
      %75 = sbr.rel (0) target = $region25
    $region24: #{tpu_custom_call.1} parent=1 // pred_region
      %76 = dma.done [#allocation4], 896
    $region25: #{tpu_custom_call.1} parent=1 // pred_fallthru
      _
    %77 = vsyncpa [#allocation3], 1
    %78 = vsyncpa [#allocation6], 1
    %79 = vsyncpa [#allocation4], 1

</llo_original>
